<compile_context>
chip_gen: v7x
topology: tpu7x:2x2x1
jax: 0.10.0
libtpu: 0.0.40
codegen_flags: <defaults>
</compile_context>

<pallas_src>
import functools

import jax
import jax.numpy as jnp
from jax.experimental import pallas as pl
from jax.experimental.pallas import tpu as pltpu


# ----------------------------------------------------------------------------
# small shared helpers
# ----------------------------------------------------------------------------
def _smooth_l1(d):
    ad = jnp.abs(d)
    return jnp.where(ad < 1.0, 0.5 * d * d, ad - 0.5)


def _iou_center(ax, ay, aw, ah, bx, by, bw, bh):
    """Elementwise IoU of center-format boxes (broadcasting)."""
    ax1 = ax - aw * 0.5
    ax2 = ax + aw * 0.5
    ay1 = ay - ah * 0.5
    ay2 = ay + ah * 0.5
    bx1 = bx - bw * 0.5
    bx2 = bx + bw * 0.5
    by1 = by - bh * 0.5
    by2 = by + bh * 0.5
    iw = jnp.maximum(jnp.minimum(ax2, bx2) - jnp.maximum(ax1, bx1), 0.0)
    ih = jnp.maximum(jnp.minimum(ay2, by2) - jnp.maximum(ay1, by1), 0.0)
    inter = iw * ih
    area_a = (ax2 - ax1) * (ay2 - ay1)
    area_b = (bx2 - bx1) * (by2 - by1)
    return inter / (area_a + area_b - inter + 1e-6)


def _conf_sq_tile(planes, gt_items, row0, n_off, *, A, B, HW, W, lw, lh,
                  net_w, net_h, anchors, ignore_thresh):
    """Per-position `no_obj * conf^2` contributions of one (rows, 128) slab.

    planes:   5 arrays (rows, 128): raw tx, ty, tw, th, objectness.
    gt_items: per GT box a 6-tuple of scalars (x1, y1, x2, y2, area, valid).
    row0:     absolute row offset of this slab within the batch.
    n_off:    float batch offset b * A * H * W of the global flat index.
    Shared by the Pallas kernel body and the pure-JAX reference path.
    """
    f32 = jnp.float32
    rows, lanes = planes[0].shape
    sx = jax.nn.sigmoid(planes[0])
    sy = jax.nn.sigmoid(planes[1])
    rw = planes[2]
    rh = planes[3]
    conf = jax.nn.sigmoid(planes[4])

    rid = jax.lax.broadcasted_iota(jnp.int32, (rows, lanes), 0) + row0
    lid = jax.lax.broadcasted_iota(jnp.int32, (rows, lanes), 1)
    p = (rid * lanes + lid).astype(f32)          # per-batch flat position (exact)

    # integer-free index math: f32 floor-divisions are exact at these magnitudes
    a_slot = jnp.floor(p / HW)
    hw = p - a_slot * HW
    cy = jnp.floor(hw / W)
    cx = hw - cy * W
    n = p + n_off
    a_bug = jnp.floor(n / (B * HW))              # original anchor-indexing quirk

    aw = jnp.zeros((rows, lanes), f32)
    ah = jnp.zeros((rows, lanes), f32)
    for ai, (anc_w, anc_h) in enumerate(anchors):
        sel = a_bug == float(ai)
        aw = jnp.where(sel, f32(anc_w), aw)
        ah = jnp.where(sel, f32(anc_h), ah)

    px = (sx + cx) / lw
    py = (sy + cy) / lh
    pw = jnp.exp(rw) * aw / net_w
    ph = jnp.exp(rh) * ah / net_h

    ax1 = px - pw * 0.5
    ax2 = px + pw * 0.5
    ay1 = py - ph * 0.5
    ay2 = py + ph * 0.5
    pa = (ax2 - ax1) * (ay2 - ay1)

    best = jnp.zeros((rows, lanes), f32)
    for (bx1, by1, bx2, by2, barea, v) in gt_items:
        iw = jnp.maximum(jnp.minimum(ax2, bx2) - jnp.maximum(ax1, bx1), 0.0)
        ih = jnp.maximum(jnp.minimum(ay2, by2) - jnp.maximum(ay1, by1), 0.0)
        inter = iw * ih
        # exact division on purpose: the <= ignore_thresh comparison must stay
        # consistent with the (exact) host-side fixup at the object columns.
        iou = inter / (pa + barea - inter + 1e-6)
        best = jnp.maximum(best, iou * v)

    in_range = (p < float(A * HW)).astype(f32)
    no_obj = (best <= ignore_thresh).astype(f32)
    return in_range * no_obj * conf * conf


# ----------------------------------------------------------------------------
# Pallas kernel: decode + ignore mask + bulk confidence-MSE accumulation
# ----------------------------------------------------------------------------
def _make_conf_sum_kernel(*, max_boxes, tile_r, A, B, HW, W, lw, lh,
                          net_w, net_h, anchors, ignore_thresh):
    def kernel(gt_ref, x_ref, s0_ref):
        b = pl.program_id(0)
        r = pl.program_id(1)

        @pl.when(r == 0)
        def _init():
            s0_ref[...] = jnp.zeros_like(s0_ref)

        planes = [x_ref[c] for c in range(5)]          # (tile_r, 128) each
        gt_items = []
        for t in range(max_boxes):
            base = t * 6
            gt_items.append(tuple(gt_ref[b, base + k] for k in range(6)))

        row0 = r * tile_r
        n_off = (b * (A * HW)).astype(jnp.float32)
        s0_ref[...] += _conf_sq_tile(
            planes, gt_items, row0, n_off,
            A=A, B=B, HW=HW, W=W, lw=lw, lh=lh, net_w=net_w, net_h=net_h,
            anchors=anchors, ignore_thresh=ignore_thresh)

    return kernel


# ----------------------------------------------------------------------------
# YoloLayer._train_forward
# ----------------------------------------------------------------------------
def yolo_layer_train_forward(x, target, *, anchors, num_classes, max_boxes,
                             ignore_thresh, rescore, scale,
                             coord_scale=1.0, conf_scale=1.0, class_scale=1.0,
                             use_pallas=True):
    f32 = jnp.float32
    B, Cin, H, W = x.shape
    A = len(anchors)
    C = num_classes
    assert Cin == A * (5 + C)
    anchors = [(float(a[0]), float(a[1])) for a in anchors]
    lw, lh = W, H
    net_w, net_h = float(scale * lw), float(scale * lh)
    HW = H * W
    P = A * HW                           # positions per batch
    ignore_thresh = float(ignore_thresh)

    x = x.astype(f32)
    anchors_arr = jnp.asarray(anchors, f32)                       # (A, 2)

    # ---------------- targets (tiny, per (batch, box)) ---------------------
    tgt = target.reshape(B, max_boxes, 5).astype(f32)
    valid = jnp.cumprod((tgt[:, :, 0] != 0).astype(f32), axis=1)  # break at 1st zero
    gx, gy = tgt[:, :, 0], tgt[:, :, 1]
    gw, gh = tgt[:, :, 2], tgt[:, :, 3]
    gcls = tgt[:, :, 4]

    # compact GT for the kernel: corners + area + validity as SMEM scalars
    gt_pack = jnp.stack([gx - gw * 0.5, gy - gh * 0.5,
                         gx + gw * 0.5, gy + gh * 0.5,
                         gw * gh, valid], axis=-1)                # (B, max_boxes, 6)
    gt_smem = gt_pack.reshape(B, max_boxes * 6)

    # ---------------- lane-dense layout of the 5 box channels --------------
    R = -(-P // 128)                     # rows of 128 lanes per batch
    tile_r = 8
    for cand in (64, 32, 16):
        if R >= cand:
            tile_r = cand
            break
    R_pad = -(-R // tile_r) * tile_r
    num_tiles = R_pad // tile_r

    xr = x.reshape(B, A, 5 + C, HW)
    x5 = xr[:, :, :5, :].transpose(0, 2, 1, 3).reshape(B, 5, P)   # p = a*HW + hw
    x5 = jnp.pad(x5, ((0, 0), (0, 0), (0, R_pad * 128 - P)))
    x5 = x5.reshape(B, 5, R_pad, 128)

    cfg = dict(A=A, B=B, HW=HW, W=W, lw=lw, lh=lh, net_w=net_w, net_h=net_h,
               anchors=anchors, ignore_thresh=ignore_thresh)

    # ---------------- bulk confidence term (heavy, Pallas) ------------------
    if use_pallas:
        kernel = _make_conf_sum_kernel(max_boxes=max_boxes, tile_r=tile_r, **cfg)
        s0_partial = pl.pallas_call(
            kernel,
            grid=(B, num_tiles),
            in_specs=[
                pl.BlockSpec(memory_space=pltpu.MemorySpace.SMEM),
                pl.BlockSpec((None, 5, tile_r, 128), lambda b, r: (b, 0, r, 0)),
            ],
            out_specs=pl.BlockSpec((None, tile_r, 128), lambda b, r: (b, 0, 0)),
            out_shape=jax.ShapeDtypeStruct((B, tile_r, 128), f32),
            compiler_params=pltpu.CompilerParams(
                dimension_semantics=("parallel", "arbitrary"),
                vmem_limit_bytes=32 * 1024 * 1024),
        )(gt_smem, x5)
        s0 = jnp.sum(s0_partial)
    else:
        gt3 = gt_smem.reshape(B, max_boxes, 6)
        parts = []
        for b in range(B):
            planes = [x5[b, c] for c in range(5)]
            items = [tuple(gt3[b, t, k] for k in range(6)) for t in range(max_boxes)]
            parts.append(jnp.sum(_conf_sq_tile(planes, items, 0, float(b * P), **cfg)))
        s0 = jnp.sum(jnp.stack(parts))

    # ---------------- tiny per-object-column math (<= B*max_boxes cols) -----
    gi = (gx * lw).astype(jnp.int32)
    gj = (gy * lh).astype(jnp.int32)
    gif = gi.astype(f32)
    gjf = gj.astype(f32)

    # best anchor by co-centered IoU (bbox_iou_mutil_center on (0,0,w,h) boxes)
    aw_n = anchors_arr[:, 0] / net_w                              # (A,)
    ah_n = anchors_arr[:, 1] / net_h
    inter_a = jnp.minimum(gw[..., None], aw_n) * jnp.minimum(gh[..., None], ah_n)
    union_a = gw[..., None] * gh[..., None] + aw_n * ah_n - inter_a + 1e-6
    best_a = jnp.argmax(inter_a / union_a, axis=-1)               # (B, max_boxes)
    best_aw = anchors_arr[best_a, 0]
    best_ah = anchors_arr[best_a, 1]

    col = best_a * HW + gj * W + gi                               # within-batch column
    idx = col + jnp.arange(B, dtype=jnp.int32)[:, None] * P       # global flat column

    # PyTorch overwrite order: the LAST valid gt that writes a column wins
    trange = jnp.arange(max_boxes)
    same = idx[:, :, None] == idx[:, None, :]                     # [b, t, t']
    later = trange[None, None, :] > trange[None, :, None]
    overwritten = jnp.any(same & later & (valid[:, None, :] > 0), axis=-1)
    winner = (valid > 0) & jnp.logical_not(overwritten)
    wf = winner.astype(f32)

    # gather raw network outputs at the assigned columns
    hwi = gj * W + gi
    raw = xr[jnp.arange(B)[:, None, None],
             best_a[:, :, None],
             jnp.arange(5 + C)[None, None, :],
             hwi[:, :, None]]                                     # (B, max_boxes, 5+C)

    sx_o = jax.nn.sigmoid(raw[..., 0])
    sy_o = jax.nn.sigmoid(raw[..., 1])
    rw_o = raw[..., 2]
    rh_o = raw[..., 3]
    conf_o = jax.nn.sigmoid(raw[..., 4])
    cls_o = jax.nn.softmax(raw[..., 5:], axis=-1)                 # (B, max_boxes, C)

    # decoded predicted box at the column (same anchor-indexing quirk)
    a_bug = idx // (B * HW)
    aw_bug = anchors_arr[a_bug, 0]
    ah_bug = anchors_arr[a_bug, 1]
    px_o = (sx_o + gif) / lw
    py_o = (sy_o + gjf) / lh
    pw_o = jnp.exp(rw_o) * aw_bug / net_w
    ph_o = jnp.exp(rh_o) * ah_bug / net_h

    # rescore target: IoU(gt box, predicted box at the column)
    iou_o = _iou_center(gx, gy, gw, gh, px_o, py_o, pw_o, ph_o)
    tconf_o = iou_o if rescore else jnp.ones_like(iou_o)

    # ignore-mask value at the column (max IoU of its pred box vs all valid gts)
    iou_cols = _iou_center(px_o[:, :, None], py_o[:, :, None],
                           pw_o[:, :, None], ph_o[:, :, None],
                           gx[:, None, :], gy[:, None, :],
                           gw[:, None, :], gh[:, None, :])        # (B, T, T')
    best_iou_o = jnp.max(iou_cols * valid[:, None, :], axis=-1)
    no_obj_o = (best_iou_o <= ignore_thresh).astype(f32)

    # regression / class targets at the column
    tx_o = gx * lw - gif
    ty_o = gy * lw - gjf          # layer *width*, faithful to the original code
    tw_o = jnp.log(jnp.where(winner, gw * net_w / best_aw, 1.0))
    th_o = jnp.log(jnp.where(winner, gh * net_h / best_ah, 1.0))
    cm_o = 2.0 - gw * gh

    # ---------------- loss assembly -----------------------------------------
    dx = cm_o * (sx_o - tx_o)
    dy = cm_o * (sy_o - ty_o)
    dw = cm_o * (rw_o - tw_o)
    dh = cm_o * (rh_o - th_o)
    loss_x = jnp.sum(wf * dx * dx) / B
    loss_y = jnp.sum(wf * dy * dy) / B
    loss_w = jnp.sum(wf * _smooth_l1(dw)) / B
    loss_h = jnp.sum(wf * _smooth_l1(dh)) / B

    onehot = jax.nn.one_hot(gcls.astype(jnp.int32), C, dtype=f32)
    dcls = cls_o - onehot
    loss_cls = jnp.sum(wf[..., None] * dcls * dcls) / B

    dconf = conf_o - tconf_o
    conf_fix = wf * (dconf * dconf - no_obj_o * conf_o * conf_o)
    loss_conf = (s0 + jnp.sum(conf_fix)) / B

    return (coord_scale * (loss_x + loss_y + loss_w + loss_h)
            + conf_scale * loss_conf + class_scale * loss_cls)


# ----------------------------------------------------------------------------
if __name__ == "__main__":
    B, H, W = 2, 16, 16
    anchors = [(10.0, 14.0), (23.0, 27.0), (37.0, 58.0)]
    num_classes = 4
    max_boxes = 4
    A = len(anchors)

    key = jax.random.PRNGKey(0)
    kx, k1, k2, k3 = jax.random.split(key, 4)
    x = jax.random.normal(kx, (B, A * (5 + num_classes), H, W), jnp.float32) * 0.5
    # target boxes: (B, max_boxes, 5) = (cx, cy, w, h, class); zero row terminates
    txy = jax.random.uniform(k1, (B, max_boxes, 2), jnp.float32, 0.05, 0.95)
    twh = jax.random.uniform(k2, (B, max_boxes, 2), jnp.float32, 0.05, 0.40)
    tcl = jax.random.randint(k3, (B, max_boxes, 1), 0, num_classes).astype(jnp.float32)
    target = jnp.concatenate([txy, twh, tcl], axis=-1)
    nvalid = jnp.array([[1, 1, 0, 0], [1, 1, 1, 0]], jnp.float32)  # 2 / 3 valid boxes
    target = target * nvalid[:, :, None]

    common = dict(anchors=anchors, num_classes=num_classes, max_boxes=max_boxes,
                  ignore_thresh=0.5, rescore=True, scale=8,
                  coord_scale=1.0, conf_scale=1.0, class_scale=1.0)
    fwd = jax.jit(functools.partial(yolo_layer_train_forward, use_pallas=True, **common))
    fwd_ref = jax.jit(functools.partial(yolo_layer_train_forward, use_pallas=False, **common))

    loss = jax.block_until_ready(fwd(x, target))
    loss_ref = jax.block_until_ready(fwd_ref(x, target))

    assert jnp.isfinite(loss), loss
    err = abs(float(loss) - float(loss_ref))
    assert err <= 1e-3 * max(1.0, abs(float(loss_ref))), (float(loss), float(loss_ref))
    print("KERNEL_OK")
</pallas_src>

<mosaic_0001>
module attributes {stable_mosaic.version = 11 : i64} {
  func.func @kernel(%arg0: i32, %arg1: i32, %arg2: memref<2x24xf32, #tpu.memory_space<smem>>, %arg3: memref<1x5x8x128xf32, #tpu.memory_space<vmem>>, %arg4: memref<1x8x128xf32, #tpu.memory_space<vmem>>) attributes {dimension_semantics = [#tpu.dimension_semantics<parallel>, #tpu.dimension_semantics<arbitrary>], iteration_bounds = array<i64: 2, 1>, scalar_prefetch = 0 : i64, scratch_operands = 0 : i64, tpu.core_type = #tpu.core_type<tc>, window_params = [{transform_indices = @transform_0, window_bounds = array<i64: 2, 24>}, {transform_indices = @transform_1, window_bounds = array<i64: 1, 5, 8, 128>}, {transform_indices = @transform_2, window_bounds = array<i64: 1, 8, 128>}]} {
    %c0_i32 = arith.constant 0 : i32
    %0 = arith.cmpi eq, %arg1, %c0_i32 : i32
    %1 = arith.extui %0 : i1 to i32
    %c0_i32_0 = arith.constant 0 : i32
    %2 = arith.cmpi ne, %1, %c0_i32_0 : i32
    scf.if %2 {
      %cst_68 = arith.constant 0.000000e+00 : f32
      %267 = vector.broadcast %cst_68 : f32 to vector<8x128xf32>
      %c0_69 = arith.constant 0 : index
      %c0_70 = arith.constant 0 : index
      %c0_71 = arith.constant 0 : index
      %268 = vector.load %arg4[%c0_69, %c0_70, %c0_71] : memref<1x8x128xf32, #tpu.memory_space<vmem>>, vector<1x8x128xf32>
      %269 = vector.shape_cast %268 : vector<1x8x128xf32> to vector<8x128xf32>
      %270 = vector.shape_cast %267 : vector<8x128xf32> to vector<1x8x128xf32>
      tpu.vector_store %arg4[%c0_69, %c0_70, %c0_71], %270 {strides = array<i32>} : memref<1x8x128xf32, #tpu.memory_space<vmem>>, vector<1x8x128xf32>,
    } else {
    }
    %c0 = arith.constant 0 : index
    %c0_1 = arith.constant 0 : index
    %c0_2 = arith.constant 0 : index
    %c0_3 = arith.constant 0 : index
    %3 = vector.load %arg3[%c0, %c0_1, %c0_2, %c0_3] : memref<1x5x8x128xf32, #tpu.memory_space<vmem>>, vector<1x1x8x128xf32>
    %4 = vector.shape_cast %3 : vector<1x1x8x128xf32> to vector<8x128xf32>
    %c0_4 = arith.constant 0 : index
    %c1 = arith.constant 1 : index
    %c0_5 = arith.constant 0 : index
    %c0_6 = arith.constant 0 : index
    %5 = vector.load %arg3[%c0_4, %c1, %c0_5, %c0_6] : memref<1x5x8x128xf32, #tpu.memory_space<vmem>>, vector<1x1x8x128xf32>
    %6 = vector.shape_cast %5 : vector<1x1x8x128xf32> to vector<8x128xf32>
    %c0_7 = arith.constant 0 : index
    %c2 = arith.constant 2 : index
    %c0_8 = arith.constant 0 : index
    %c0_9 = arith.constant 0 : index
    %7 = vector.load %arg3[%c0_7, %c2, %c0_8, %c0_9] : memref<1x5x8x128xf32, #tpu.memory_space<vmem>>, vector<1x1x8x128xf32>
    %8 = vector.shape_cast %7 : vector<1x1x8x128xf32> to vector<8x128xf32>
    %c0_10 = arith.constant 0 : index
    %c3 = arith.constant 3 : index
    %c0_11 = arith.constant 0 : index
    %c0_12 = arith.constant 0 : index
    %9 = vector.load %arg3[%c0_10, %c3, %c0_11, %c0_12] : memref<1x5x8x128xf32, #tpu.memory_space<vmem>>, vector<1x1x8x128xf32>
    %10 = vector.shape_cast %9 : vector<1x1x8x128xf32> to vector<8x128xf32>
    %c0_13 = arith.constant 0 : index
    %c4 = arith.constant 4 : index
    %c0_14 = arith.constant 0 : index
    %c0_15 = arith.constant 0 : index
    %11 = vector.load %arg3[%c0_13, %c4, %c0_14, %c0_15] : memref<1x5x8x128xf32, #tpu.memory_space<vmem>>, vector<1x1x8x128xf32>
    %12 = vector.shape_cast %11 : vector<1x1x8x128xf32> to vector<8x128xf32>
    %13 = arith.index_cast %arg0 : i32 to index
    %c0_16 = arith.constant 0 : index
    %14 = memref.load %arg2[%13, %c0_16] : memref<2x24xf32, #tpu.memory_space<smem>>
    %15 = arith.index_cast %arg0 : i32 to index
    %c1_17 = arith.constant 1 : index
    %16 = memref.load %arg2[%15, %c1_17] : memref<2x24xf32, #tpu.memory_space<smem>>
    %17 = arith.index_cast %arg0 : i32 to index
    %c2_18 = arith.constant 2 : index
    %18 = memref.load %arg2[%17, %c2_18] : memref<2x24xf32, #tpu.memory_space<smem>>
    %19 = arith.index_cast %arg0 : i32 to index
    %c3_19 = arith.constant 3 : index
    %20 = memref.load %arg2[%19, %c3_19] : memref<2x24xf32, #tpu.memory_space<smem>>
    %21 = arith.index_cast %arg0 : i32 to index
    %c4_20 = arith.constant 4 : index
    %22 = memref.load %arg2[%21, %c4_20] : memref<2x24xf32, #tpu.memory_space<smem>>
    %23 = arith.index_cast %arg0 : i32 to index
    %c5 = arith.constant 5 : index
    %24 = memref.load %arg2[%23, %c5] : memref<2x24xf32, #tpu.memory_space<smem>>
    %25 = arith.index_cast %arg0 : i32 to index
    %c6 = arith.constant 6 : index
    %26 = memref.load %arg2[%25, %c6] : memref<2x24xf32, #tpu.memory_space<smem>>
    %27 = arith.index_cast %arg0 : i32 to index
    %c7 = arith.constant 7 : index
    %28 = memref.load %arg2[%27, %c7] : memref<2x24xf32, #tpu.memory_space<smem>>
    %29 = arith.index_cast %arg0 : i32 to index
    %c8 = arith.constant 8 : index
    %30 = memref.load %arg2[%29, %c8] : memref<2x24xf32, #tpu.memory_space<smem>>
    %31 = arith.index_cast %arg0 : i32 to index
    %c9 = arith.constant 9 : index
    %32 = memref.load %arg2[%31, %c9] : memref<2x24xf32, #tpu.memory_space<smem>>
    %33 = arith.index_cast %arg0 : i32 to index
    %c10 = arith.constant 10 : index
    %34 = memref.load %arg2[%33, %c10] : memref<2x24xf32, #tpu.memory_space<smem>>
    %35 = arith.index_cast %arg0 : i32 to index
    %c11 = arith.constant 11 : index
    %36 = memref.load %arg2[%35, %c11] : memref<2x24xf32, #tpu.memory_space<smem>>
    %37 = arith.index_cast %arg0 : i32 to index
    %c12 = arith.constant 12 : index
    %38 = memref.load %arg2[%37, %c12] : memref<2x24xf32, #tpu.memory_space<smem>>
    %39 = arith.index_cast %arg0 : i32 to index
    %c13 = arith.constant 13 : index
    %40 = memref.load %arg2[%39, %c13] : memref<2x24xf32, #tpu.memory_space<smem>>
    %41 = arith.index_cast %arg0 : i32 to index
    %c14 = arith.constant 14 : index
    %42 = memref.load %arg2[%41, %c14] : memref<2x24xf32, #tpu.memory_space<smem>>
    %43 = arith.index_cast %arg0 : i32 to index
    %c15 = arith.constant 15 : index
    %44 = memref.load %arg2[%43, %c15] : memref<2x24xf32, #tpu.memory_space<smem>>
    %45 = arith.index_cast %arg0 : i32 to index
    %c16 = arith.constant 16 : index
    %46 = memref.load %arg2[%45, %c16] : memref<2x24xf32, #tpu.memory_space<smem>>
    %47 = arith.index_cast %arg0 : i32 to index
    %c17 = arith.constant 17 : index
    %48 = memref.load %arg2[%47, %c17] : memref<2x24xf32, #tpu.memory_space<smem>>
    %49 = arith.index_cast %arg0 : i32 to index
    %c18 = arith.constant 18 : index
    %50 = memref.load %arg2[%49, %c18] : memref<2x24xf32, #tpu.memory_space<smem>>
    %51 = arith.index_cast %arg0 : i32 to index
    %c19 = arith.constant 19 : index
    %52 = memref.load %arg2[%51, %c19] : memref<2x24xf32, #tpu.memory_space<smem>>
    %53 = arith.index_cast %arg0 : i32 to index
    %c20 = arith.constant 20 : index
    %54 = memref.load %arg2[%53, %c20] : memref<2x24xf32, #tpu.memory_space<smem>>
    %55 = arith.index_cast %arg0 : i32 to index
    %c21 = arith.constant 21 : index
    %56 = memref.load %arg2[%55, %c21] : memref<2x24xf32, #tpu.memory_space<smem>>
    %57 = arith.index_cast %arg0 : i32 to index
    %c22 = arith.constant 22 : index
    %58 = memref.load %arg2[%57, %c22] : memref<2x24xf32, #tpu.memory_space<smem>>
    %59 = arith.index_cast %arg0 : i32 to index
    %c23 = arith.constant 23 : index
    %60 = memref.load %arg2[%59, %c23] : memref<2x24xf32, #tpu.memory_space<smem>>
    %c8_i32 = arith.constant 8 : i32
    %61 = arith.muli %arg1, %c8_i32 : i32
    %c768_i32 = arith.constant 768 : i32
    %62 = arith.muli %arg0, %c768_i32 : i32
    %63 = arith.sitofp %62 : i32 to f32
    %c0_21 = arith.constant 0 : index
    %c0_22 = arith.constant 0 : index
    %c0_23 = arith.constant 0 : index
    %64 = vector.load %arg4[%c0_21, %c0_22, %c0_23] : memref<1x8x128xf32, #tpu.memory_space<vmem>>, vector<1x8x128xf32>
    %65 = vector.shape_cast %64 : vector<1x8x128xf32> to vector<8x128xf32>
    %66 = arith.negf %4 : vector<8x128xf32>
    %67 = math.exp %66 : vector<8x128xf32>
    %cst = arith.constant 1.000000e+00 : f32
    %68 = vector.broadcast %cst : f32 to vector<8x128xf32>
    %69 = arith.addf %68, %67 : vector<8x128xf32>
    %70 = arith.divf %68, %69 : vector<8x128xf32>
    %71 = arith.negf %6 : vector<8x128xf32>
    %72 = math.exp %71 : vector<8x128xf32>
    %cst_24 = arith.constant 1.000000e+00 : f32
    %73 = vector.broadcast %cst_24 : f32 to vector<8x128xf32>
    %74 = arith.addf %73, %72 : vector<8x128xf32>
    %75 = arith.divf %73, %74 : vector<8x128xf32>
    %76 = arith.negf %12 : vector<8x128xf32>
    %77 = math.exp %76 : vector<8x128xf32>
    %cst_25 = arith.constant 1.000000e+00 : f32
    %78 = vector.broadcast %cst_25 : f32 to vector<8x128xf32>
    %79 = arith.addf %78, %77 : vector<8x128xf32>
    %80 = arith.divf %78, %79 : vector<8x128xf32>
    %81 = tpu.iota {dimensions = array<i32: 0>} : vector<8x128xi32>
    %82 = vector.broadcast %61 : i32 to vector<8x128xi32>
    %83 = arith.addi %81, %82 : vector<8x128xi32>
    %84 = tpu.iota {dimensions = array<i32: 1>} : vector<8x128xi32>
    %c128_i32 = arith.constant 128 : i32
    %85 = vector.broadcast %c128_i32 : i32 to vector<8x128xi32>
    %86 = arith.muli %83, %85 : vector<8x128xi32>
    %87 = arith.addi %86, %84 : vector<8x128xi32>
    %88 = arith.sitofp %87 : vector<8x128xi32> to vector<8x128xf32>
    %cst_26 = arith.constant 2.560000e+02 : f32
    %89 = vector.broadcast %cst_26 : f32 to vector<8x128xf32>
    %90 = arith.divf %88, %89 : vector<8x128xf32>
    %91 = math.floor %90 : vector<8x128xf32>
    %cst_27 = arith.constant 2.560000e+02 : f32
    %92 = vector.broadcast %cst_27 : f32 to vector<8x128xf32>
    %93 = arith.mulf %91, %92 : vector<8x128xf32>
    %94 = arith.subf %88, %93 : vector<8x128xf32>
    %cst_28 = arith.constant 1.600000e+01 : f32
    %95 = vector.broadcast %cst_28 : f32 to vector<8x128xf32>
    %96 = arith.divf %94, %95 : vector<8x128xf32>
    %97 = math.floor %96 : vector<8x128xf32>
    %cst_29 = arith.constant 1.600000e+01 : f32
    %98 = vector.broadcast %cst_29 : f32 to vector<8x128xf32>
    %99 = arith.mulf %97, %98 : vector<8x128xf32>
    %100 = arith.subf %94, %99 : vector<8x128xf32>
    %101 = vector.broadcast %63 : f32 to vector<8x128xf32>
    %102 = arith.addf %88, %101 : vector<8x128xf32>
    %cst_30 = arith.constant 5.120000e+02 : f32
    %103 = vector.broadcast %cst_30 : f32 to vector<8x128xf32>
    %104 = arith.divf %102, %103 : vector<8x128xf32>
    %105 = math.floor %104 : vector<8x128xf32>
    %cst_31 = arith.constant 0.000000e+00 : f32
    %106 = vector.broadcast %cst_31 : f32 to vector<8x128xf32>
    %cst_32 = arith.constant 0.000000e+00 : f32
    %107 = vector.broadcast %cst_32 : f32 to vector<8x128xf32>
    %cst_33 = arith.constant 0.000000e+00 : f32
    %108 = vector.broadcast %cst_33 : f32 to vector<8x128xf32>
    %109 = arith.cmpf oeq, %105, %108 : vector<8x128xf32>
    %cst_34 = arith.constant 1.000000e+01 : f32
    %110 = vector.broadcast %cst_34 : f32 to vector<8x128xf32>
    %111 = arith.select %109, %110, %106 : vector<8x128xi1>, vector<8x128xf32>
    %cst_35 = arith.constant 1.400000e+01 : f32
    %112 = vector.broadcast %cst_35 : f32 to vector<8x128xf32>
    %113 = arith.select %109, %112, %107 : vector<8x128xi1>, vector<8x128xf32>
    %cst_36 = arith.constant 1.000000e+00 : f32
    %114 = vector.broadcast %cst_36 : f32 to vector<8x128xf32>
    %115 = arith.cmpf oeq, %105, %114 : vector<8x128xf32>
    %cst_37 = arith.constant 2.300000e+01 : f32
    %116 = vector.broadcast %cst_37 : f32 to vector<8x128xf32>
    %117 = arith.select %115, %116, %111 : vector<8x128xi1>, vector<8x128xf32>
    %cst_38 = arith.constant 2.700000e+01 : f32
    %118 = vector.broadcast %cst_38 : f32 to vector<8x128xf32>
    %119 = arith.select %115, %118, %113 : vector<8x128xi1>, vector<8x128xf32>
    %cst_39 = arith.constant 2.000000e+00 : f32
    %120 = vector.broadcast %cst_39 : f32 to vector<8x128xf32>
    %121 = arith.cmpf oeq, %105, %120 : vector<8x128xf32>
    %cst_40 = arith.constant 3.700000e+01 : f32
    %122 = vector.broadcast %cst_40 : f32 to vector<8x128xf32>
    %123 = arith.select %121, %122, %117 : vector<8x128xi1>, vector<8x128xf32>
    %cst_41 = arith.constant 5.800000e+01 : f32
    %124 = vector.broadcast %cst_41 : f32 to vector<8x128xf32>
    %125 = arith.select %121, %124, %119 : vector<8x128xi1>, vector<8x128xf32>
    %126 = arith.addf %70, %100 : vector<8x128xf32>
    %cst_42 = arith.constant 1.600000e+01 : f32
    %127 = vector.broadcast %cst_42 : f32 to vector<8x128xf32>
    %128 = arith.divf %126, %127 : vector<8x128xf32>
    %129 = arith.addf %75, %97 : vector<8x128xf32>
    %cst_43 = arith.constant 1.600000e+01 : f32
    %130 = vector.broadcast %cst_43 : f32 to vector<8x128xf32>
    %131 = arith.divf %129, %130 : vector<8x128xf32>
    %132 = math.exp %8 : vector<8x128xf32>
    %133 = arith.mulf %132, %123 : vector<8x128xf32>
    %cst_44 = arith.constant 1.280000e+02 : f32
    %134 = vector.broadcast %cst_44 : f32 to vector<8x128xf32>
    %135 = arith.divf %133, %134 : vector<8x128xf32>
    %136 = math.exp %10 : vector<8x128xf32>
    %137 = arith.mulf %136, %125 : vector<8x128xf32>
    %cst_45 = arith.constant 1.280000e+02 : f32
    %138 = vector.broadcast %cst_45 : f32 to vector<8x128xf32>
    %139 = arith.divf %137, %138 : vector<8x128xf32>
    %cst_46 = arith.constant 5.000000e-01 : f32
    %140 = vector.broadcast %cst_46 : f32 to vector<8x128xf32>
    %141 = arith.mulf %135, %140 : vector<8x128xf32>
    %142 = arith.subf %128, %141 : vector<8x128xf32>
    %cst_47 = arith.constant 5.000000e-01 : f32
    %143 = vector.broadcast %cst_47 : f32 to vector<8x128xf32>
    %144 = arith.mulf %135, %143 : vector<8x128xf32>
    %145 = arith.addf %128, %144 : vector<8x128xf32>
    %cst_48 = arith.constant 5.000000e-01 : f32
    %146 = vector.broadcast %cst_48 : f32 to vector<8x128xf32>
    %147 = arith.mulf %139, %146 : vector<8x128xf32>
    %148 = arith.subf %131, %147 : vector<8x128xf32>
    %cst_49 = arith.constant 5.000000e-01 : f32
    %149 = vector.broadcast %cst_49 : f32 to vector<8x128xf32>
    %150 = arith.mulf %139, %149 : vector<8x128xf32>
    %151 = arith.addf %131, %150 : vector<8x128xf32>
    %152 = arith.subf %145, %142 : vector<8x128xf32>
    %153 = arith.subf %151, %148 : vector<8x128xf32>
    %154 = arith.mulf %152, %153 : vector<8x128xf32>
    %cst_50 = arith.constant 0.000000e+00 : f32
    %155 = vector.broadcast %cst_50 : f32 to vector<8x128xf32>
    %156 = vector.broadcast %18 : f32 to vector<8x128xf32>
    %157 = arith.minimumf %145, %156 : vector<8x128xf32>
    %158 = vector.broadcast %14 : f32 to vector<8x128xf32>
    %159 = arith.maximumf %142, %158 : vector<8x128xf32>
    %160 = arith.subf %157, %159 : vector<8x128xf32>
    %cst_51 = arith.constant 0.000000e+00 : f32
    %161 = vector.broadcast %cst_51 : f32 to vector<8x128xf32>
    %162 = arith.maximumf %160, %161 : vector<8x128xf32>
    %163 = vector.broadcast %20 : f32 to vector<8x128xf32>
    %164 = arith.minimumf %151, %163 : vector<8x128xf32>
    %165 = vector.broadcast %16 : f32 to vector<8x128xf32>
    %166 = arith.maximumf %148, %165 : vector<8x128xf32>
    %167 = arith.subf %164, %166 : vector<8x128xf32>
    %cst_52 = arith.constant 0.000000e+00 : f32
    %168 = vector.broadcast %cst_52 : f32 to vector<8x128xf32>
    %169 = arith.maximumf %167, %168 : vector<8x128xf32>
    %170 = arith.mulf %162, %169 : vector<8x128xf32>
    %171 = vector.broadcast %22 : f32 to vector<8x128xf32>
    %172 = arith.addf %154, %171 : vector<8x128xf32>
    %173 = arith.subf %172, %170 : vector<8x128xf32>
    %cst_53 = arith.constant 9.99999997E-7 : f32
    %174 = vector.broadcast %cst_53 : f32 to vector<8x128xf32>
    %175 = arith.addf %173, %174 : vector<8x128xf32>
    %176 = arith.divf %170, %175 : vector<8x128xf32>
    %177 = vector.broadcast %24 : f32 to vector<8x128xf32>
    %178 = arith.mulf %176, %177 : vector<8x128xf32>
    %179 = arith.maximumf %155, %178 : vector<8x128xf32>
    %180 = vector.broadcast %30 : f32 to vector<8x128xf32>
    %181 = arith.minimumf %145, %180 : vector<8x128xf32>
    %182 = vector.broadcast %26 : f32 to vector<8x128xf32>
    %183 = arith.maximumf %142, %182 : vector<8x128xf32>
    %184 = arith.subf %181, %183 : vector<8x128xf32>
    %cst_54 = arith.constant 0.000000e+00 : f32
    %185 = vector.broadcast %cst_54 : f32 to vector<8x128xf32>
    %186 = arith.maximumf %184, %185 : vector<8x128xf32>
    %187 = vector.broadcast %32 : f32 to vector<8x128xf32>
    %188 = arith.minimumf %151, %187 : vector<8x128xf32>
    %189 = vector.broadcast %28 : f32 to vector<8x128xf32>
    %190 = arith.maximumf %148, %189 : vector<8x128xf32>
    %191 = arith.subf %188, %190 : vector<8x128xf32>
    %cst_55 = arith.constant 0.000000e+00 : f32
    %192 = vector.broadcast %cst_55 : f32 to vector<8x128xf32>
    %193 = arith.maximumf %191, %192 : vector<8x128xf32>
    %194 = arith.mulf %186, %193 : vector<8x128xf32>
    %195 = vector.broadcast %34 : f32 to vector<8x128xf32>
    %196 = arith.addf %154, %195 : vector<8x128xf32>
    %197 = arith.subf %196, %194 : vector<8x128xf32>
    %cst_56 = arith.constant 9.99999997E-7 : f32
    %198 = vector.broadcast %cst_56 : f32 to vector<8x128xf32>
    %199 = arith.addf %197, %198 : vector<8x128xf32>
    %200 = arith.divf %194, %199 : vector<8x128xf32>
    %201 = vector.broadcast %36 : f32 to vector<8x128xf32>
    %202 = arith.mulf %200, %201 : vector<8x128xf32>
    %203 = arith.maximumf %179, %202 : vector<8x128xf32>
    %204 = vector.broadcast %42 : f32 to vector<8x128xf32>
    %205 = arith.minimumf %145, %204 : vector<8x128xf32>
    %206 = vector.broadcast %38 : f32 to vector<8x128xf32>
    %207 = arith.maximumf %142, %206 : vector<8x128xf32>
    %208 = arith.subf %205, %207 : vector<8x128xf32>
    %cst_57 = arith.constant 0.000000e+00 : f32
    %209 = vector.broadcast %cst_57 : f32 to vector<8x128xf32>
    %210 = arith.maximumf %208, %209 : vector<8x128xf32>
    %211 = vector.broadcast %44 : f32 to vector<8x128xf32>
    %212 = arith.minimumf %151, %211 : vector<8x128xf32>
    %213 = vector.broadcast %40 : f32 to vector<8x128xf32>
    %214 = arith.maximumf %148, %213 : vector<8x128xf32>
    %215 = arith.subf %212, %214 : vector<8x128xf32>
    %cst_58 = arith.constant 0.000000e+00 : f32
    %216 = vector.broadcast %cst_58 : f32 to vector<8x128xf32>
    %217 = arith.maximumf %215, %216 : vector<8x128xf32>
    %218 = arith.mulf %210, %217 : vector<8x128xf32>
    %219 = vector.broadcast %46 : f32 to vector<8x128xf32>
    %220 = arith.addf %154, %219 : vector<8x128xf32>
    %221 = arith.subf %220, %218 : vector<8x128xf32>
    %cst_59 = arith.constant 9.99999997E-7 : f32
    %222 = vector.broadcast %cst_59 : f32 to vector<8x128xf32>
    %223 = arith.addf %221, %222 : vector<8x128xf32>
    %224 = arith.divf %218, %223 : vector<8x128xf32>
    %225 = vector.broadcast %48 : f32 to vector<8x128xf32>
    %226 = arith.mulf %224, %225 : vector<8x128xf32>
    %227 = arith.maximumf %203, %226 : vector<8x128xf32>
    %228 = vector.broadcast %54 : f32 to vector<8x128xf32>
    %229 = arith.minimumf %145, %228 : vector<8x128xf32>
    %230 = vector.broadcast %50 : f32 to vector<8x128xf32>
    %231 = arith.maximumf %142, %230 : vector<8x128xf32>
    %232 = arith.subf %229, %231 : vector<8x128xf32>
    %cst_60 = arith.constant 0.000000e+00 : f32
    %233 = vector.broadcast %cst_60 : f32 to vector<8x128xf32>
    %234 = arith.maximumf %232, %233 : vector<8x128xf32>
    %235 = vector.broadcast %56 : f32 to vector<8x128xf32>
    %236 = arith.minimumf %151, %235 : vector<8x128xf32>
    %237 = vector.broadcast %52 : f32 to vector<8x128xf32>
    %238 = arith.maximumf %148, %237 : vector<8x128xf32>
    %239 = arith.subf %236, %238 : vector<8x128xf32>
    %cst_61 = arith.constant 0.000000e+00 : f32
    %240 = vector.broadcast %cst_61 : f32 to vector<8x128xf32>
    %241 = arith.maximumf %239, %240 : vector<8x128xf32>
    %242 = arith.mulf %234, %241 : vector<8x128xf32>
    %243 = vector.broadcast %58 : f32 to vector<8x128xf32>
    %244 = arith.addf %154, %243 : vector<8x128xf32>
    %245 = arith.subf %244, %242 : vector<8x128xf32>
    %cst_62 = arith.constant 9.99999997E-7 : f32
    %246 = vector.broadcast %cst_62 : f32 to vector<8x128xf32>
    %247 = arith.addf %245, %246 : vector<8x128xf32>
    %248 = arith.divf %242, %247 : vector<8x128xf32>
    %249 = vector.broadcast %60 : f32 to vector<8x128xf32>
    %250 = arith.mulf %248, %249 : vector<8x128xf32>
    %251 = arith.maximumf %227, %250 : vector<8x128xf32>
    %cst_63 = arith.constant 7.680000e+02 : f32
    %252 = vector.broadcast %cst_63 : f32 to vector<8x128xf32>
    %253 = arith.cmpf olt, %88, %252 : vector<8x128xf32>
    %254 = arith.extui %253 : vector<8x128xi1> to vector<8x128xi32>
    %255 = arith.sitofp %254 : vector<8x128xi32> to vector<8x128xf32>
    %cst_64 = arith.constant 5.000000e-01 : f32
    %256 = vector.broadcast %cst_64 : f32 to vector<8x128xf32>
    %257 = arith.cmpf ole, %251, %256 : vector<8x128xf32>
    %258 = arith.extui %257 : vector<8x128xi1> to vector<8x128xi32>
    %259 = arith.sitofp %258 : vector<8x128xi32> to vector<8x128xf32>
    %260 = arith.mulf %255, %259 : vector<8x128xf32>
    %261 = arith.mulf %260, %80 : vector<8x128xf32>
    %262 = arith.mulf %261, %80 : vector<8x128xf32>
    %263 = arith.addf %65, %262 : vector<8x128xf32>
    %c0_65 = arith.constant 0 : index
    %c0_66 = arith.constant 0 : index
    %c0_67 = arith.constant 0 : index
    %264 = vector.load %arg4[%c0_65, %c0_66, %c0_67] : memref<1x8x128xf32, #tpu.memory_space<vmem>>, vector<1x8x128xf32>
    %265 = vector.shape_cast %264 : vector<1x8x128xf32> to vector<8x128xf32>
    %266 = vector.shape_cast %263 : vector<8x128xf32> to vector<1x8x128xf32>
    tpu.vector_store %arg4[%c0_65, %c0_66, %c0_67], %266 {strides = array<i32>} : memref<1x8x128xf32, #tpu.memory_space<vmem>>, vector<1x8x128xf32>,
    return
  }
  func.func @transform_0(%arg0: i32, %arg1: i32) -> (i32, i32) {
    %c0_i32 = arith.constant 0 : i32
    %c0_i32_0 = arith.constant 0 : i32
    %c0_i32_1 = arith.constant 0 : i32
    return %c0_i32, %c0_i32_0 : i32, i32
  }
  func.func @transform_1(%arg0: i32, %arg1: i32) -> (i32, i32, i32, i32) {
    %c0_i32 = arith.constant 0 : i32
    %c0_i32_0 = arith.constant 0 : i32
    %c0_i32_1 = arith.constant 0 : i32
    return %arg0, %c0_i32, %arg1, %c0_i32_0 : i32, i32, i32, i32
  }
  func.func @transform_2(%arg0: i32, %arg1: i32) -> (i32, i32, i32) {
    %c0_i32 = arith.constant 0 : i32
    %c0_i32_0 = arith.constant 0 : i32
    %c0_i32_1 = arith.constant 0 : i32
    return %arg0, %c0_i32, %c0_i32_0 : i32, i32, i32
  }
}

</mosaic_0001>

<llo_original>
// kernel: yolo_layer_train_forward.1
$region0: #{yolo_layer_train_forward.1}
  #allocation0 [shape = 'u32[]', space=smem, size = 0x4, offset = 0x4, fixed_abs, tag = 'smem constant byte address 0x4 - core index']
  #allocation1 [shape = 'u32[144,128]{1,0:T(1,128)}', space=vmem, size = 0x12000, scoped, tag = 'internal scratch']
  %s0 = inlined_call_operand.vmem [shape: f32[2,24], index: 0, kind: input, shape index: {}]
  %s1 = inlined_call_operand.vmem [shape: f32[2,5,8,128], index: 1, kind: input, shape index: {}]
  %s2 = inlined_call_operand.vmem [shape: f32[2,8,128], index: 2, kind: output, shape index: {}]
  %s3 = sld [smem:[#allocation0]]
  $region49: #{yolo_layer_train_forward.1} parent=0
    _
  %s5 = ssub.s32 1, %s3
  %s6 = scalar_select 0, %s5, %s3
  $region1: #{yolo_layer_train_forward.1} parent=0
    #allocation2 [shape = 'u8[1024]{0}', space=smem, size = 0x400, scoped, tag = 'input window, operand 0, single buffered']
    #allocation3 [shape = 's32[2]{0}', space=sflag, size = 0x8, scoped, tag = 'scoped memory for yolo_layer_train_forward.1']
    %7 = vsyncpa [#allocation3], 0
    loop: start=0, step=1, limit=4
    $region2: #{yolo_layer_train_forward.1} parent=1 // loop_pre_header
      _
    $region3: #{yolo_layer_train_forward.1} parent=1 // loop_header
      %s9 = sphi 0, %s13
      %p10 = scmp.ge.s32.totalorder %s9, 4
      %s16 = sphi 0, %s28
      %s17 = sphi 0, %s24
      %s18 = sphi 0, %s16
      %s19 = sphi 0, %s17
      %s20 = sphi 0, %s18
      %s21 = sphi 0, %s19
      %s29 = sphi 0, %s29
      %s31 = sphi 0, %s29
      %s32 = sphi 0, %s31
      %s46 = sphi 0, %s32
      %s54 = sphi 0, %s56
      %s57 = sphi 0, %s54
      %s58 = sphi 0, %s57
      %s74 = sphi 0, %s58
      %s80 = sphi 0, %s82
      %s83 = sphi 0, %s80
      %s84 = sphi 0, %s83
      %s100 = sphi 0, %s84
    $region4: #{yolo_layer_train_forward.1} parent=1 // loop_header_branch
      %12 = sbr.rel (%p10) target = $region8
    $region5: #{yolo_layer_train_forward.1} parent=1 // loop_body
      %s14 = ssub.s32 %s9, 1
      %s15 = ssub.s32 %s9, 2
      %s22 = sadd.s32 1, %s17
      %p23 = scmp.ge.s32.totalorder %s22, 1
      %s24 = scalar_select %p23, 0, %s22
      %s25 = sadd.s32 1, %s16
      %s26 = scalar_select %p23, %s25, %s16
      %p27 = scmp.ge.s32.totalorder %s26, 2
      %s28 = scalar_select %p27, 0, %s26
      %s30 = sadd.s32 %s29, 1
      %p33 = scmp.eq.s32.totalorder %s9, 1
      %p34 = scmp.ne.s32.totalorder %s29, %s31
      %p35 = scmp.eq.s32.totalorder %s9, 0
      %p36 = por %p34, %p35
      %p37 = scmp.ne.s32.totalorder %s29, %s31
      %p38 = scmp.eq.s32.totalorder %s14, 1
      %p39 = por %p37, %p38
      %p40 = scmp.ne.s32.totalorder %s31, %s32
      %p41 = scmp.eq.s32.totalorder %s14, 0
      %p42 = por %p40, %p41
      %p43 = scmp.ne.s32.totalorder %s31, %s32
      %p44 = scmp.eq.s32.totalorder %s15, 1
      %p45 = por %p43, %p44
      %p47 = scmp.ne.s32.totalorder %s32, %s46
      %p48 = scmp.eq.s32.totalorder %s15, 0
      %p49 = por %p47, %p48
      %s50 = ssub.s32 %s16, %s28
      %s51 = ssub.s32 %s17, %s24
      %s52 = sor.u32 %s50, %s51
      %p53 = scmp.eq.s32.totalorder %s52, 0
      %s55 = sadd.s32 %s54, 1
      %s56 = scalar_select %p53, %s54, %s55
      %p59 = pneg %p53
      %p60 = scmp.eq.s32.totalorder %s9, 1
      %p61 = por %p59, %p60
      %p62 = scmp.ne.s32.totalorder %s54, %s57
      %p63 = scmp.eq.s32.totalorder %s9, 0
      %p64 = por %p62, %p63
      %p65 = scmp.ne.s32.totalorder %s54, %s57
      %p66 = scmp.eq.s32.totalorder %s14, 1
      %p67 = por %p65, %p66
      %p68 = scmp.ne.s32.totalorder %s57, %s58
      %p69 = scmp.eq.s32.totalorder %s14, 0
      %p70 = por %p68, %p69
      %p71 = scmp.ne.s32.totalorder %s57, %s58
      %p72 = scmp.eq.s32.totalorder %s15, 1
      %p73 = por %p71, %p72
      %p75 = scmp.ne.s32.totalorder %s58, %s74
      %p76 = scmp.eq.s32.totalorder %s15, 0
      %p77 = por %p75, %p76
      %s78 = ssub.s32 %s16, %s28
      %p79 = scmp.eq.s32.totalorder %s78, 0
      %s81 = sadd.s32 %s80, 1
      %s82 = scalar_select %p79, %s80, %s81
      %p85 = pneg %p79
      %p86 = scmp.eq.s32.totalorder %s9, 1
      %p87 = por %p85, %p86
      %p88 = scmp.ne.s32.totalorder %s80, %s83
      %p89 = scmp.eq.s32.totalorder %s9, 0
      %p90 = por %p88, %p89
      %p91 = scmp.ne.s32.totalorder %s80, %s83
      %p92 = scmp.eq.s32.totalorder %s14, 1
      %p93 = por %p91, %p92
      %p94 = scmp.ne.s32.totalorder %s83, %s84
      %p95 = scmp.eq.s32.totalorder %s14, 0
      %p96 = por %p94, %p95
      %p97 = scmp.ne.s32.totalorder %s83, %s84
      %p98 = scmp.eq.s32.totalorder %s15, 1
      %p99 = por %p97, %p98
      %p101 = scmp.ne.s32.totalorder %s84, %s100
      %p102 = scmp.eq.s32.totalorder %s15, 0
      %p103 = por %p101, %p102
      %p104 = scmp.le.s32.totalorder 1, %s9
      %p105 = scmp.lt.s32.totalorder %s9, 3
      %p106 = pnand %p104, %p105
      %p107 = pneg %p106
      // Predicated region
      $region9: #{yolo_layer_train_forward.1} parent=5 // pred_check
        _
      $region10: #{yolo_layer_train_forward.1} parent=5 // pred_check_branch
        %109 = sbr.rel (%p106) target = $region12
      $region11: #{yolo_layer_train_forward.1} parent=5 // pred_region
        %s110 = ssub.s32 %s9, 1
        // Predicated region
        $region13: #{yolo_layer_train_forward.1} parent=11 // pred_check
          %p111 = pneg %p42
        $region14: #{yolo_layer_train_forward.1} parent=11 // pred_check_branch
          %113 = sbr.rel (%p111) target = $region16
        $region15: #{yolo_layer_train_forward.1} parent=11 // pred_region
          %s115 = ssub.s32 32, 32
          %116 = vsyncadd [#allocation3], %s115
          %s118 = sshll.u32 %s0, 4
          %s119 = int_to_ptr.vmem [resolvable:$true] %s118
          %121 = dma.vmem_to_smem %s119, 32, [#allocation2], [#allocation3]
        $region16: #{yolo_layer_train_forward.1} parent=11 // pred_fallthru
          _
      $region12: #{yolo_layer_train_forward.1} parent=5 // pred_fallthru
        _
      %p122 = scmp.lt.s32.totalorder %s9, 2
      // Predicated region
      $region17: #{yolo_layer_train_forward.1} parent=5 // pred_check
        %p123 = pneg %p122
      $region18: #{yolo_layer_train_forward.1} parent=5 // pred_check_branch
        %125 = sbr.rel (%p123) target = $region20
      $region19: #{yolo_layer_train_forward.1} parent=5 // pred_region
        // Predicated region
        $region21: #{yolo_layer_train_forward.1} parent=19 // pred_check
          %p126 = pneg %p64
        $region22: #{yolo_layer_train_forward.1} parent=19 // pred_check_branch
          %128 = sbr.rel (%p126) target = $region24
        $region23: #{yolo_layer_train_forward.1} parent=19 // pred_region
          %p129 = scmp.lt.s32.totalorder %s16, 1
          %s130 = scalar_select %p129, %s16, 1
          %p131 = scmp.lt.s32.totalorder %s17, 0
          %s132 = scalar_select %p131, %s17, 0
          %s133 = smul.addr %s130, 5
          %s134 = sadd.s32 %s132, %s133
          %s135 = smul.addr %s134, 8
          %s136 = scalar_lea.vmem %s1, %s135
        $region24: #{yolo_layer_train_forward.1} parent=19 // pred_fallthru
          _
      $region20: #{yolo_layer_train_forward.1} parent=5 // pred_fallthru
        _
      %p137 = scmp.le.s32.totalorder 1, %s9
      %p138 = scmp.lt.s32.totalorder %s9, 3
      %p139 = pnand %p137, %p138
      %p140 = pneg %p139
      // Predicated region
      $region25: #{yolo_layer_train_forward.1} parent=5 // pred_check
        _
      $region26: #{yolo_layer_train_forward.1} parent=5 // pred_check_branch
        %142 = sbr.rel (%p139) target = $region28
      $region27: #{yolo_layer_train_forward.1} parent=5 // pred_region
        %s143 = ssub.s32 %s9, 1
        // Predicated region
        $region29: #{yolo_layer_train_forward.1} parent=27 // pred_check
          %p144 = pneg %p42
        $region30: #{yolo_layer_train_forward.1} parent=27 // pred_check_branch
          %146 = sbr.rel (%p144) target = $region32
        $region31: #{yolo_layer_train_forward.1} parent=27 // pred_region
          %147 = dma.done [#allocation3], 32
        $region32: #{yolo_layer_train_forward.1} parent=27 // pred_fallthru
          _
        %148 = sfence
        %p149 = pneg %p42
        %p150 = pneg %p39
        %p151 = scmp.lt.s32.totalorder %s18, 1
        %s152 = scalar_select %p151, %s18, 1
        %p153 = scmp.lt.s32.totalorder %s19, 0
        %s154 = scalar_select %p153, %s19, 0
        %s155 = smul.addr %s152, 5
        %s156 = sadd.s32 %s154, %s155
        %s157 = smul.addr %s156, 8
        %s158 = scalar_lea.vmem %s1, %s157
        %p159 = pneg %p70
        %p160 = pneg %p67
        %p161 = pneg %p96
        %p162 = pneg %p93
        %p163 = scmp.lt.s32.totalorder %s18, 1
        %s164 = scalar_select %p163, %s18, 1
        %s165 = smul.addr %s164, 8
        %s166 = scalar_lea.vmem %s2, %s165
        %p167 = scmp.lt.s32.totalorder %s18, 1
        %s168 = scalar_select %p167, %s18, 1
        %p169 = scmp.lt.s32.totalorder %s19, 0
        %s170 = scalar_select %p169, %s19, 0
        %s171 = smul.addr %s168, 5
        %s172 = sadd.s32 %s170, %s171
        %s173 = smul.addr %s172, 8
        %s174 = scalar_lea.vmem %s1, %s173
        %p175 = scmp.lt.s32.totalorder %s18, 1
        %s176 = scalar_select %p175, %s18, 1
        %s177 = smul.addr %s176, 8
        %s178 = scalar_lea.vmem %s2, %s177
        %p179 = scmp.eq.s32.totalorder %s19, 0
        // Predicated region
        $region33: #{yolo_layer_train_forward.1} parent=27 // pred_check
          %p180 = pneg %p179
        $region34: #{yolo_layer_train_forward.1} parent=27 // pred_check_branch
          %182 = sbr.rel (%p180) target = $region36
        $region35: #{yolo_layer_train_forward.1} parent=27 // pred_region
          %183 = vst [vmem:[%s178] sm:$0xff] 0.0
        $region36: #{yolo_layer_train_forward.1} parent=27 // pred_fallthru
          _
        %v184 = vld [vmem:[%s174] sm:$0xff]
        %s185 = scalar_lea.vmem %s174, 8
        %v186 = vld [vmem:[%s185] sm:$0xff]
        %s187 = scalar_lea.vmem %s174, 16
        %v188 = vld [vmem:[%s187] sm:$0xff]
        %s189 = scalar_lea.vmem %s174, 24
        %v190 = vld [vmem:[%s189] sm:$0xff]
        %s191 = scalar_lea.vmem %s174, 32
        %v192 = vld [vmem:[%s191] sm:$0xff]
        %s193 = smul.u32 %s18, 128
        %s194 = sld [smem:[#allocation2 + %s193]]
        %s195 = sadd.s32 %s193, 1
        %s196 = sld [smem:[#allocation2 + %s195]]
        %s197 = sadd.s32 %s193, 2
        %s198 = sld [smem:[#allocation2 + %s197]]
        %s199 = sadd.s32 %s193, 3
        %s200 = sld [smem:[#allocation2 + %s199]]
        %s201 = sadd.s32 %s193, 4
        %s202 = sld [smem:[#allocation2 + %s201]]
        %s203 = sadd.s32 %s193, 5
        %s204 = sld [smem:[#allocation2 + %s203]]
        %s205 = sadd.s32 %s193, 6
        %s206 = sld [smem:[#allocation2 + %s205]]
        %s207 = sadd.s32 %s193, 7
        %s208 = sld [smem:[#allocation2 + %s207]]
        %s209 = sadd.s32 %s193, 8
        %s210 = sld [smem:[#allocation2 + %s209]]
        %s211 = sadd.s32 %s193, 9
        %s212 = sld [smem:[#allocation2 + %s211]]
        %s213 = sadd.s32 %s193, 10
        %s214 = sld [smem:[#allocation2 + %s213]]
        %s215 = sadd.s32 %s193, 11
        %s216 = sld [smem:[#allocation2 + %s215]]
        %s217 = sadd.s32 %s193, 12
        %s218 = sld [smem:[#allocation2 + %s217]]
        %s219 = sadd.s32 %s193, 13
        %s220 = sld [smem:[#allocation2 + %s219]]
        %s221 = sadd.s32 %s193, 14
        %s222 = sld [smem:[#allocation2 + %s221]]
        %s223 = sadd.s32 %s193, 15
        %s224 = sld [smem:[#allocation2 + %s223]]
        %s225 = sadd.s32 %s193, 16
        %s226 = sld [smem:[#allocation2 + %s225]]
        %s227 = sadd.s32 %s193, 17
        %s228 = sld [smem:[#allocation2 + %s227]]
        %s229 = sadd.s32 %s193, 18
        %s230 = sld [smem:[#allocation2 + %s229]]
        %s231 = sadd.s32 %s193, 19
        %s232 = sld [smem:[#allocation2 + %s231]]
        %s233 = sadd.s32 %s193, 20
        %s234 = sld [smem:[#allocation2 + %s233]]
        %s235 = sadd.s32 %s193, 21
        %s236 = sld [smem:[#allocation2 + %s235]]
        %s237 = sadd.s32 %s193, 22
        %s238 = sld [smem:[#allocation2 + %s237]]
        %s239 = sadd.s32 %s193, 23
        %s240 = sld [smem:[#allocation2 + %s239]]
        %s241 = smul.u32 %s19, 8
        %s242 = smul.u32 %s18, 768
        %s243 = scvt.s32.f32 %s242
        %v244 = vld [vmem:[%s178] sm:$0xff]
        %v245 = vxor.u32 %v184, 2147483648
        %v246 = vmul.f32 %v245, 1.442695
        %v247 = vpow.pop %v246
        %v248 = vadd.f32 %v247, 1.0
        %v249 = vrcp.pop %v248
        %v250 = vmul.f32 1.0, %v249
        %v251 = vxor.u32 %v186, 2147483648
        %v252 = vmul.f32 %v251, 1.442695
        %v253 = vpow.pop %v252
        %v254 = vadd.f32 %v253, 1.0
        %v255 = vrcp.pop %v254
        %v256 = vmul.f32 1.0, %v255
        %v257 = vxor.u32 %v192, 2147483648
        %v258 = vmul.f32 %v257, 1.442695
        %v259 = vpow.pop %v258
        %v260 = vadd.f32 %v259, 1.0
        %v261 = vrcp.pop %v260
        %v262 = vmul.f32 1.0, %v261
        %v263 = vlaneseq
        %v264 = vshrl.u32 %v263, 7
        %v265 = vstv %s241
        %v266 = vadd.s32 %v264, %v265
        %v267 = vlaneseq
        %v268 = vand.u32 %v267, 127
        %v269 = vmul.u32 %v266, 128
        %v270 = vadd.s32 %v269, %v268
        %v271 = vcvt.s32.f32 %v270
        %v272 = vrcp.pop 256.0
        %v273 = vmul.f32 %v271, %v272
        %v274 = vfloor.f32 %v273
        %v275 = vmul.f32 %v274, 256.0
        %v276 = vsub.f32 %v271, %v275
        %v277 = vrcp.pop 16.0
        %v278 = vmul.f32 %v276, %v277
        %v279 = vfloor.f32 %v278
        %v280 = vmul.f32 %v279, 16.0
        %v281 = vsub.f32 %v276, %v280
        %v282 = vstv %s243
        %v283 = vadd.f32 %v271, %v282
        %v284 = vrcp.pop 512.0
        %v285 = vmul.f32 %v283, %v284
        %v286 = vfloor.f32 %v285
        %vm287 = vcmp.eq.f32.partialorder %v286, 0.0
        %v288 = vsel %vm287, 10.0, 0.0
        %v289 = vsel %vm287, 14.0, 0.0
        %vm290 = vcmp.eq.f32.partialorder %v286, 1.0
        %v291 = vsel %vm290, 23.0, %v288
        %v292 = vsel %vm290, 27.0, %v289
        %vm293 = vcmp.eq.f32.partialorder %v286, 2.0
        %v294 = vsel %vm293, 37.0, %v291
        %v295 = vsel %vm293, 58.0, %v292
        %v296 = vadd.f32 %v250, %v281
        %v297 = vmul.f32 %v296, %v277
        %v298 = vadd.f32 %v256, %v279
        %v299 = vmul.f32 %v298, %v277
        %v300 = vmul.f32 %v188, 1.442695
        %v301 = vpow.pop %v300
        %v302 = vmul.f32 %v301, %v294
        %v303 = vrcp.pop 128.0
        %v304 = vmul.f32 %v302, %v303
        %v305 = vmul.f32 %v190, 1.442695
        %v306 = vpow.pop %v305
        %v307 = vmul.f32 %v306, %v295
        %v308 = vmul.f32 %v307, %v303
        %v309 = vmul.f32 %v304, 0.5
        %v310 = vsub.f32 %v297, %v309
        %v311 = vadd.f32 %v297, %v309
        %v312 = vmul.f32 %v308, 0.5
        %v313 = vsub.f32 %v299, %v312
        %v314 = vadd.f32 %v299, %v312
        %v315 = vsub.f32 %v311, %v310
        %v316 = vsub.f32 %v314, %v313
        %v317 = vmul.f32 %v315, %v316
        %v318 = vstv %s198
        %v319 = vmin.f32 %v311, %v318
        %v320 = vstv %s194
        %v321 = vmax.f32 %v310, %v320
        %v322 = vsub.f32 %v319, %v321
        %v323 = vmax.f32 %v322, 0.0
        %v324 = vstv %s200
        %v325 = vmin.f32 %v314, %v324
        %v326 = vstv %s196
        %v327 = vmax.f32 %v313, %v326
        %v328 = vsub.f32 %v325, %v327
        %v329 = vmax.f32 %v328, 0.0
        %v330 = vmul.f32 %v323, %v329
        %v331 = vstv %s202
        %v332 = vadd.f32 %v317, %v331
        %v333 = vsub.f32 %v332, %v330
        %v334 = vadd.f32 %v333, 1e-06
        %v335 = vrcp.pop %v334
        %v336 = vmul.f32 %v330, %v335
        %v337 = vstv %s204
        %v338 = vmul.f32 %v336, %v337
        %v339 = vmax.f32 %v338, 0.0
        %v340 = vstv %s210
        %v341 = vmin.f32 %v311, %v340
        %v342 = vstv %s206
        %v343 = vmax.f32 %v310, %v342
        %v344 = vsub.f32 %v341, %v343
        %v345 = vmax.f32 %v344, 0.0
        %v346 = vstv %s212
        %v347 = vmin.f32 %v314, %v346
        %v348 = vstv %s208
        %v349 = vmax.f32 %v313, %v348
        %v350 = vsub.f32 %v347, %v349
        %v351 = vmax.f32 %v350, 0.0
        %v352 = vmul.f32 %v345, %v351
        %v353 = vstv %s214
        %v354 = vadd.f32 %v317, %v353
        %v355 = vsub.f32 %v354, %v352
        %v356 = vadd.f32 %v355, 1e-06
        %v357 = vrcp.pop %v356
        %v358 = vmul.f32 %v352, %v357
        %v359 = vstv %s216
        %v360 = vmul.f32 %v358, %v359
        %v361 = vmax.f32 %v339, %v360
        %v362 = vstv %s222
        %v363 = vmin.f32 %v311, %v362
        %v364 = vstv %s218
        %v365 = vmax.f32 %v310, %v364
        %v366 = vsub.f32 %v363, %v365
        %v367 = vmax.f32 %v366, 0.0
        %v368 = vstv %s224
        %v369 = vmin.f32 %v314, %v368
        %v370 = vstv %s220
        %v371 = vmax.f32 %v313, %v370
        %v372 = vsub.f32 %v369, %v371
        %v373 = vmax.f32 %v372, 0.0
        %v374 = vmul.f32 %v367, %v373
        %v375 = vstv %s226
        %v376 = vadd.f32 %v317, %v375
        %v377 = vsub.f32 %v376, %v374
        %v378 = vadd.f32 %v377, 1e-06
        %v379 = vrcp.pop %v378
        %v380 = vmul.f32 %v374, %v379
        %v381 = vstv %s228
        %v382 = vmul.f32 %v380, %v381
        %v383 = vmax.f32 %v361, %v382
        %v384 = vstv %s234
        %v385 = vmin.f32 %v311, %v384
        %v386 = vstv %s230
        %v387 = vmax.f32 %v310, %v386
        %v388 = vsub.f32 %v385, %v387
        %v389 = vmax.f32 %v388, 0.0
        %v390 = vstv %s236
        %v391 = vmin.f32 %v314, %v390
        %v392 = vstv %s232
        %v393 = vmax.f32 %v313, %v392
        %v394 = vsub.f32 %v391, %v393
        %v395 = vmax.f32 %v394, 0.0
        %v396 = vmul.f32 %v389, %v395
        %v397 = vstv %s238
        %v398 = vadd.f32 %v317, %v397
        %v399 = vsub.f32 %v398, %v396
        %v400 = vadd.f32 %v399, 1e-06
        %v401 = vrcp.pop %v400
        %v402 = vmul.f32 %v396, %v401
        %v403 = vstv %s240
        %v404 = vmul.f32 %v402, %v403
        %v405 = vmax.f32 %v383, %v404
        %vm406 = vcmp.lt.f32.partialorder %v271, 768.0
        %v407 = vsel %vm406, 1, 0
        %v408 = vcvt.s32.f32 %v407
        %vm409 = vcmp.le.f32.partialorder %v405, 0.5
        %v410 = vsel %vm409, 1, 0
        %v411 = vcvt.s32.f32 %v410
        %v412 = vmul.f32 %v408, %v411
        %v413 = vmul.f32 %v412, %v262
        %v414 = vmul.f32 %v413, %v262
        %v415 = vadd.f32 %v244, %v414
        %416 = vst [vmem:[%s178] sm:$0xff] %v415
        %p417 = scmp.lt.s32.totalorder %s18, 1
        %s418 = scalar_select %p417, %s18, 1
        %s419 = smul.addr %s418, 8
        %s420 = scalar_lea.vmem %s2, %s419
        // Predicated region
        $region37: #{yolo_layer_train_forward.1} parent=27 // pred_check
          %p421 = pneg %p93
        $region38: #{yolo_layer_train_forward.1} parent=27 // pred_check_branch
          %423 = sbr.rel (%p421) target = $region40
        $region39: #{yolo_layer_train_forward.1} parent=27 // pred_region
          _
        $region40: #{yolo_layer_train_forward.1} parent=27 // pred_fallthru
          _
      $region28: #{yolo_layer_train_forward.1} parent=5 // pred_fallthru
        _
      %p424 = scmp.le.s32.totalorder 2, %s9
      // Predicated region
      $region41: #{yolo_layer_train_forward.1} parent=5 // pred_check
        %p425 = pneg %p424
      $region42: #{yolo_layer_train_forward.1} parent=5 // pred_check_branch
        %427 = sbr.rel (%p425) target = $region44
      $region43: #{yolo_layer_train_forward.1} parent=5 // pred_region
        %s428 = ssub.s32 %s9, 2
        // Predicated region
        $region45: #{yolo_layer_train_forward.1} parent=43 // pred_check
          %p429 = pneg %p99
        $region46: #{yolo_layer_train_forward.1} parent=43 // pred_check_branch
          %431 = sbr.rel (%p429) target = $region48
        $region47: #{yolo_layer_train_forward.1} parent=43 // pred_region
          %p432 = scmp.lt.s32.totalorder %s20, 1
          %s433 = scalar_select %p432, %s20, 1
          %s434 = smul.addr %s433, 8
          %s435 = scalar_lea.vmem %s2, %s434
        $region48: #{yolo_layer_train_forward.1} parent=43 // pred_fallthru
          _
      $region44: #{yolo_layer_train_forward.1} parent=5 // pred_fallthru
        _
    $region6: #{yolo_layer_train_forward.1} parent=1 // loop_footer
      %s13 = sadd.s32 1, %s9
    $region7: #{yolo_layer_train_forward.1} parent=1 // loop_footer_branch
      %8 = sbr.rel target = $region3
    $region8: #{yolo_layer_train_forward.1} parent=1 // loop_exit
      _
    %436 = vsyncpa [#allocation3], 1
    %s437 = scalar_lea.sflag [#allocation3], 1
    %438 = vsyncpa %s437, 1

</llo_original>
